<compile_context>
chip_gen: v5e
topology: v5e:2x2
jax: 0.10.0
libtpu: 0.0.40
codegen_flags: <defaults>
</compile_context>

<pallas_src>
import functools

import jax
import jax.numpy as jnp
from jax import lax
from jax.experimental import pallas as pl
from jax.experimental.pallas import tpu as pltpu

_LANE = 128
_SUB = 16            # bf16 sublane tile


def _round_up(x, m):
    return (x + m - 1) // m * m


def _pad_axis(x, axis, size):
    pad = size - x.shape[axis]
    if pad <= 0:
        return x
    widths = [(0, 0)] * x.ndim
    widths[axis] = (0, pad)
    return jnp.pad(x, widths)


def _default_act_dtype():
    """bf16 pre-activation add + tanh only where the VPU/EUP have bf16 paths (v6e / v7x)."""
    try:
        kind = jax.devices()[0].device_kind.lower()
    except Exception:
        return jnp.float32
    if ("v6" in kind) or ("v7" in kind) or ("7x" in kind):
        return jnp.bfloat16
    return jnp.float32       # v5e and older: no bf16 VALU/EUP


def _vmem_policy():
    """(tile-search budget, vmem_limit cap) per chip generation."""
    cap = None
    try:
        cap = getattr(pltpu.get_tpu_info(), "vmem_capacity_bytes", None)
    except Exception:
        cap = None
    if cap is None or cap <= 64 * 1024 * 1024:
        # v7x-class (64 MiB physical / TC) or unknown: leave headroom for Mosaic scratch / DMA.
        return 36 * 1024 * 1024, 52 * 1024 * 1024
    # v5e / v6e: 128 MiB physical VMEM.
    return 88 * 1024 * 1024, 104 * 1024 * 1024


# ----------------------------------------------------------------------------
# set_memory() analogue: one-time (per encoder output) preparation.
# ----------------------------------------------------------------------------
def precompute_attention_memory(memory, wk, *, key_dtype=jnp.bfloat16, mem_dtype=jnp.bfloat16):
    n, t, e = memory.shape
    u = wk.shape[0]
    t_k = _round_up(t, _SUB)      # memory's T is a sublane axis -> pad to 16, not 128
    t_l = _round_up(t, _LANE)     # T on lanes for scores / prev / alignments / mask
    e_p = _round_up(e, _LANE)
    u_p = _round_up(u, _SUB)

    mem_p = _pad_axis(_pad_axis(memory, 2, e_p), 1, t_k).astype(mem_dtype)       # [N, Tk, Ep]

    # key projection (torch key_layer), exact f32, laid out [N, U, T]: U sublanes, T lanes
    keys = jnp.einsum('nte,ue->nut', memory.astype(jnp.float32), wk.astype(jnp.float32),
                      precision=lax.Precision.HIGHEST)                            # [N, U, T] f32
    keys_t = _pad_axis(_pad_axis(keys, 2, t_l), 1, u_p).astype(key_dtype)         # [N, Up, Tl]

    # single exclusive-cumsum mask, built once (inclusive = dot(x, excl) + x in-kernel)
    row = lax.broadcasted_iota(jnp.int32, (t_l, t_l), 0)
    col = lax.broadcasted_iota(jnp.int32, (t_l, t_l), 1)
    excl = (row < col).astype(jnp.float32)                                        # [Tl, Tl]

    return {"memory": mem_p, "keys_t": keys_t, "excl": excl,
            "t": t, "e": e, "u": u, "t_k": t_k, "t_l": t_l, "e_p": e_p, "u_p": u_p}


# ----------------------------------------------------------------------------
# Per-decode-step Pallas kernel.
# ----------------------------------------------------------------------------
def _monotonic_step_kernel(qp_ref, keys_ref, mem_ref, prev_ref, v_ref, excl_ref,
                           ctx_ref, align_ref, *, act_dtype, t_k):
    qp = qp_ref[...]            # [Nb, Up, 1]  f32   query projection (column layout)
    keys = keys_ref[...]        # [Nb, Up, Tl] bf16  precomputed key projection
    prev = prev_ref[...]        # [Nb, Tl]     f32
    v = v_ref[...]              # [Up, 1]      f32
    excl = excl_ref[...]        # [Tl, Tl]     f32

    # --- Bahdanau energy: v . tanh(q_proj + proj_key), U on sublanes, T on lanes ---
    pre = qp.astype(act_dtype) + keys.astype(act_dtype)                  # [Nb, Up, Tl]
    act = jnp.tanh(pre).astype(jnp.float32)
    scores = jnp.sum(act * v[None, :, :], axis=1)                        # [Nb, Tl] f32 (sublane reduce)
    p_choose = jax.nn.sigmoid(scores)

    # --- monotonic attention: safe_cumprod (exclusive) / cumsum as exact-f32 MXU matmuls ---
    log_1mp = jnp.log(jnp.clip(1.0 - p_choose, 1e-20, 1.0))
    cumprod_1mp = jnp.exp(jnp.dot(log_1mp, excl,
                                  precision=lax.Precision.HIGHEST,
                                  preferred_element_type=jnp.float32))   # exclusive cumprod
    ratio = prev / jnp.clip(cumprod_1mp, 1e-10, 1.0)
    cum_ratio = jnp.dot(ratio, excl, precision=lax.Precision.HIGHEST,
                        preferred_element_type=jnp.float32) + ratio       # inclusive = excl + I
    attention = p_choose * cumprod_1mp * cum_ratio                        # [Nb, Tl] f32
    align_ref[...] = attention

    # --- context = alignments @ memory (single query row per batch; bf16 feed, f32 acc) ---
    mem = mem_ref[...]                                                    # [Nb, Tk, Ep] bf16
    att = attention[:, None, :t_k].astype(mem.dtype)                      # [Nb, 1, Tk]
    ctx = jnp.einsum('nqt,nte->nqe', att, mem, preferred_element_type=jnp.float32)
    ctx_ref[...] = ctx[:, 0, :]


# ----------------------------------------------------------------------------
# forward() analogue for a single decoder step.
# ----------------------------------------------------------------------------
def bahdanau_monotonic_attention_step(queries, previous_alignments, mem_state, wq, v, *,
                                      act_dtype=None):
    """queries [N,1,D] (or [N,D]), previous_alignments [N,T], wq [U,D], v [U].
    Returns (contexts [N,E], alignments [N,T]) in f32."""
    if act_dtype is None:
        act_dtype = _default_act_dtype()

    mem_p, keys_t, excl = mem_state["memory"], mem_state["keys_t"], mem_state["excl"]
    t, e = mem_state["t"], mem_state["e"]
    t_k, t_l = mem_state["t_k"], mem_state["t_l"]
    e_p, u_p = mem_state["e_p"], mem_state["u_p"]
    n = mem_p.shape[0]
    u = mem_state["u"]

    # per-step query projection: tiny [N,D]@[D,U] kept in exact f32; hand the kernel a
    # per-batch column ([N,Up,1]) so no lane->sublane relayout happens inside the kernel.
    q2 = queries.reshape(n, -1).astype(jnp.float32)
    q_proj = jnp.einsum('nd,ud->nu', q2, wq.astype(jnp.float32),
                        precision=lax.Precision.HIGHEST)                       # [N, U]
    q_proj = _pad_axis(q_proj, 1, u_p)[:, :, None]                             # [N, Up, 1]

    prev_p = _pad_axis(previous_alignments.astype(jnp.float32), 1, t_l)        # [N, Tl]
    v_col = _pad_axis(v.astype(jnp.float32).reshape(u, 1), 0, u_p)             # [Up, 1]

    key_bytes = jnp.dtype(keys_t.dtype).itemsize
    mem_bytes = jnp.dtype(mem_p.dtype).itemsize
    act_bytes = jnp.dtype(act_dtype).itemsize

    def vmem_bytes(nb):
        stream = (nb * u_p * 4 + nb * u_p * t_l * key_bytes + nb * t_k * e_p * mem_bytes
                  + nb * t_l * 4 + nb * e_p * 4 + nb * t_l * 4)
        resident = u_p * 4 + t_l * t_l * 4                 # v, exclusive mask (constant blocks)
        temps = (2 * nb * u_p * t_l * act_bytes            # pre / tanh
                 + nb * u_p * t_l * 4                      # f32 upcast for the v-weighted reduce
                 + 8 * nb * t_l * 4)                       # scores / p / log / cumprod / ratio ...
        return 2 * stream + 2 * resident + temps

    budget, limit_cap = _vmem_policy()
    cands = [c for c in (1024, 768, 512, 384, 320, 256, 192, 160, 128, 112, 96,
                         80, 64, 48, 32, 16, 8) if c <= n]
    block_n = None
    for c in cands:
        if vmem_bytes(c) <= budget:
            block_n = c
            break
    if block_n is None:
        block_n = n if n < 8 else 8
    # keep >=2 grid steps when the batch is big enough so the parallel axis can shard
    # across both TensorCores on dual-TC parts (v7x); harmless on single-TC chips.
    if n >= 32:
        block_n = min(block_n, max(16, _round_up(pl.cdiv(n, 2), 16)))

    grid = (pl.cdiv(n, block_n),)
    vmem_limit = int(min(limit_cap, max(int(1.3 * vmem_bytes(block_n)), 16 * 1024 * 1024)))

    flops = int(4 * n * t_l * t_l + 2 * n * t_k * e_p + 5 * n * u_p * t_l + 8 * n * t_l)
    transcend = int(n * u_p * t_l + 4 * n * t_l)
    bytes_acc = int(q_proj.size * 4 + keys_t.size * key_bytes + mem_p.size * mem_bytes
                    + prev_p.size * 4 + v_col.size * 4 + excl.size * 4
                    + n * e_p * 4 + n * t_l * 4)

    kernel = functools.partial(_monotonic_step_kernel, act_dtype=act_dtype, t_k=t_k)

    ctx_p, align_p = pl.pallas_call(
        kernel,
        out_shape=(jax.ShapeDtypeStruct((n, e_p), jnp.float32),
                   jax.ShapeDtypeStruct((n, t_l), jnp.float32)),
        grid_spec=pltpu.PrefetchScalarGridSpec(
            num_scalar_prefetch=0,
            grid=grid,
            in_specs=[
                pl.BlockSpec((block_n, u_p, 1), lambda i: (i, 0, 0)),      # q_proj column
                pl.BlockSpec((block_n, u_p, t_l), lambda i: (i, 0, 0)),    # precomputed keys
                pl.BlockSpec((block_n, t_k, e_p), lambda i: (i, 0, 0)),    # memory (T padded to 16)
                pl.BlockSpec((block_n, t_l), lambda i: (i, 0)),            # previous alignments
                pl.BlockSpec((u_p, 1), lambda i: (0, 0)),                  # v (resident)
                pl.BlockSpec((t_l, t_l), lambda i: (0, 0)),                # exclusive-cumsum mask
            ],
            out_specs=(
                pl.BlockSpec((block_n, e_p), lambda i: (i, 0)),            # contexts
                pl.BlockSpec((block_n, t_l), lambda i: (i, 0)),            # alignments
            ),
        ),
        compiler_params=pltpu.CompilerParams(
            dimension_semantics=("parallel",),
            vmem_limit_bytes=vmem_limit),
        cost_estimate=pl.CostEstimate(flops=flops, transcendentals=transcend,
                                      bytes_accessed=bytes_acc),
    )(q_proj, keys_t, mem_p, prev_p, v_col, excl)

    return ctx_p[:, :e], align_p[:, :t]


def bahdanau_monotonic_attention(queries, memory, previous_alignments, wq, wk, v, *,
                                 act_dtype=None):
    """Convenience wrapper: set_memory + one forward step."""
    mem_state = precompute_attention_memory(memory, wk)
    return bahdanau_monotonic_attention_step(queries, previous_alignments, mem_state, wq, v,
                                             act_dtype=act_dtype)


# ----------------------------------------------------------------------------
# References.
# ----------------------------------------------------------------------------
def _reference_f32(queries, memory, prev, wq, wk, v):
    """Exact f32 transcription of the PyTorch forward (normalize=False, no length mask)."""
    f32, hp = jnp.float32, lax.Precision.HIGHEST
    q, mem = queries.astype(f32), memory.astype(f32)
    qp = jnp.einsum('nod,ud->nou', q, wq.astype(f32), precision=hp)        # [N,1,U]
    kp = jnp.einsum('nte,ue->ntu', mem, wk.astype(f32), precision=hp)      # [N,T,U]
    w = jnp.einsum('ntu,u->nt', jnp.tanh(qp + kp), v.astype(f32), precision=hp)
    p = jax.nn.sigmoid(w)
    logsum = jnp.cumsum(jnp.log(jnp.clip(1.0 - p, 1e-20, 1.0)), axis=1)
    logsum_excl = jnp.concatenate([jnp.zeros((p.shape[0], 1), f32), logsum], axis=1)[:, :-1]
    cumprod = jnp.exp(logsum_excl)
    att = p * cumprod * jnp.cumsum(prev.astype(f32) / jnp.clip(cumprod, 1e-10, 1.0), axis=1)
    ctx = jnp.einsum('nt,nte->ne', att, mem, precision=hp)
    return ctx, att


def _reference_matched(queries, memory, prev, wq, wk, v, act_dtype):
    """Same math at the kernel's mixed precision (bf16 keys / act dtype / bf16 context feeds),
    isolating the Pallas implementation from the intentional dtype choices."""
    f32, hp = jnp.float32, lax.Precision.HIGHEST
    n, _, d = queries.shape
    qp = jnp.einsum('nd,ud->nu', queries.reshape(n, d).astype(f32), wq.astype(f32),
                    precision=hp)                                                   # [N,U] f32
    keys = jnp.einsum('nte,ue->nut', memory.astype(f32), wk.astype(f32), precision=hp)
    keys = keys.astype(jnp.bfloat16)                                                # kernel keys dtype
    pre = qp[:, :, None].astype(act_dtype) + keys.astype(act_dtype)
    act = jnp.tanh(pre).astype(f32)
    w = jnp.einsum('nut,u->nt', act, v.astype(f32), precision=hp)
    p = jax.nn.sigmoid(w)
    logsum = jnp.cumsum(jnp.log(jnp.clip(1.0 - p, 1e-20, 1.0)), axis=1)
    logsum_excl = jnp.concatenate([jnp.zeros((p.shape[0], 1), f32), logsum], axis=1)[:, :-1]
    cumprod = jnp.exp(logsum_excl)
    att = p * cumprod * jnp.cumsum(prev.astype(f32) / jnp.clip(cumprod, 1e-10, 1.0), axis=1)
    ctx = jnp.einsum('nt,nte->ne', att.astype(jnp.bfloat16), memory.astype(jnp.bfloat16),
                     preferred_element_type=f32)
    return ctx, att


if __name__ == "__main__":
    # small shapes consistent with the module:
    # batch=2, seq(T)=8, encoder_dim=16, decoder_dim=32, num_units=32
    N, T, E, D, U = 2, 8, 16, 32, 32

    key = jax.random.PRNGKey(0)
    k_q, k_m, k_p, k_wq, k_wk, k_v = jax.random.split(key, 6)

    queries = jax.random.normal(k_q, (N, 1, D), dtype=jnp.float32)
    memory = jax.random.normal(k_m, (N, T, E), dtype=jnp.float32)
    previous_alignments = jax.nn.softmax(
        jax.random.normal(k_p, (N, T), dtype=jnp.float32), axis=-1)

    # deterministic parameter init (shapes from __init__): v[U], Wq[U,D], Wk[U,E]
    wq = jax.random.normal(k_wq, (U, D), dtype=jnp.float32) * 0.1
    wk = jax.random.normal(k_wk, (U, E), dtype=jnp.float32) * 0.1
    v = jax.random.uniform(k_v, (U,), dtype=jnp.float32)

    act_dtype = _default_act_dtype()
    ctx, align = bahdanau_monotonic_attention(queries, memory, previous_alignments, wq, wk, v,
                                              act_dtype=act_dtype)
    jax.block_until_ready((ctx, align))

    assert ctx.shape == (N, E) and align.shape == (N, T)
    assert bool(jnp.all(jnp.isfinite(ctx))) and bool(jnp.all(jnp.isfinite(align)))

    # tight check: identical math at the kernel's mixed precision (validates the Pallas kernel)
    ctx_m, align_m = _reference_matched(queries, memory, previous_alignments, wq, wk, v, act_dtype)
    assert jnp.allclose(align, align_m, atol=2e-3, rtol=2e-3), "alignment mismatch (matched precision)"
    assert jnp.allclose(ctx, ctx_m, atol=4e-3, rtol=4e-3), "context mismatch (matched precision)"

    # loose check: exact f32 PyTorch math, bounding the intentional bf16 mixed-precision deviation
    ctx_f, align_f = _reference_f32(queries, memory, previous_alignments, wq, wk, v)
    tol = 0.1 if act_dtype == jnp.bfloat16 else 0.03
    assert jnp.allclose(align, align_f, atol=tol, rtol=tol), "alignment deviates from f32 reference"
    assert jnp.allclose(ctx, ctx_f, atol=tol, rtol=tol), "context deviates from f32 reference"

    print("KERNEL_OK")
</pallas_src>

<mosaic_0001>
module attributes {stable_mosaic.version = 11 : i64} {
  func.func @_monotonic_step_kernel(%arg0: i32, %arg1: memref<2x32x1xf32, #tpu.memory_space<vmem>>, %arg2: memref<2x32x128xbf16, #tpu.memory_space<vmem>>, %arg3: memref<2x16x128xbf16, #tpu.memory_space<vmem>>, %arg4: memref<2x128xf32, #tpu.memory_space<vmem>>, %arg5: memref<32x1xf32, #tpu.memory_space<vmem>>, %arg6: memref<128x128xf32, #tpu.memory_space<vmem>>, %arg7: memref<2x128xf32, #tpu.memory_space<vmem>>, %arg8: memref<2x128xf32, #tpu.memory_space<vmem>>) attributes {dimension_semantics = [#tpu.dimension_semantics<parallel>], iteration_bounds = array<i64: 1>, scalar_prefetch = 0 : i64, scratch_operands = 0 : i64, tpu.core_type = #tpu.core_type<tc>, window_params = [{transform_indices = @transform_0, window_bounds = array<i64: 2, 32, 1>}, {transform_indices = @transform_1, window_bounds = array<i64: 2, 32, 128>}, {transform_indices = @transform_2, window_bounds = array<i64: 2, 16, 128>}, {transform_indices = @transform_3, window_bounds = array<i64: 2, 128>}, {pipeline_mode = #tpu.pipeline_mode<synchronous>, transform_indices = @transform_4, window_bounds = array<i64: 32, 1>}, {pipeline_mode = #tpu.pipeline_mode<synchronous>, transform_indices = @transform_5, window_bounds = array<i64: 128, 128>}, {transform_indices = @transform_6, window_bounds = array<i64: 2, 128>}, {transform_indices = @transform_7, window_bounds = array<i64: 2, 128>}]} {
    %c0 = arith.constant 0 : index
    %c0_0 = arith.constant 0 : index
    %c0_1 = arith.constant 0 : index
    %0 = vector.load %arg1[%c0, %c0_0, %c0_1] : memref<2x32x1xf32, #tpu.memory_space<vmem>>, vector<2x32x1xf32>
    %c0_2 = arith.constant 0 : index
    %c0_3 = arith.constant 0 : index
    %c0_4 = arith.constant 0 : index
    %1 = vector.load %arg2[%c0_2, %c0_3, %c0_4] : memref<2x32x128xbf16, #tpu.memory_space<vmem>>, vector<2x32x128xbf16>
    %c0_5 = arith.constant 0 : index
    %c0_6 = arith.constant 0 : index
    %2 = vector.load %arg4[%c0_5, %c0_6] : memref<2x128xf32, #tpu.memory_space<vmem>>, vector<2x128xf32>
    %c0_7 = arith.constant 0 : index
    %c0_8 = arith.constant 0 : index
    %3 = vector.load %arg5[%c0_7, %c0_8] : memref<32x1xf32, #tpu.memory_space<vmem>>, vector<32x1xf32>
    %c0_9 = arith.constant 0 : index
    %c0_10 = arith.constant 0 : index
    %4 = vector.load %arg6[%c0_9, %c0_10] : memref<128x128xf32, #tpu.memory_space<vmem>>, vector<128x128xf32>
    %5 = arith.extf %1 : vector<2x32x128xbf16> to vector<2x32x128xf32>
    %6 = vector.broadcast %0 : vector<2x32x1xf32> to vector<2x32x128xf32>
    %7 = arith.addf %6, %5 : vector<2x32x128xf32>
    %8 = math.tanh %7 : vector<2x32x128xf32>
    %9 = vector.shape_cast %3 : vector<32x1xf32> to vector<1x32x1xf32>
    %10 = vector.broadcast %9 : vector<1x32x1xf32> to vector<2x32x128xf32>
    %11 = arith.mulf %8, %10 : vector<2x32x128xf32>
    %cst = arith.constant dense<0.000000e+00> : vector<2x128xf32>
    %12 = vector.multi_reduction <add>, %11, %cst [1] : vector<2x32x128xf32> to vector<2x128xf32>
    %13 = arith.negf %12 : vector<2x128xf32>
    %14 = math.exp %13 : vector<2x128xf32>
    %cst_11 = arith.constant 1.000000e+00 : f32
    %15 = vector.broadcast %cst_11 : f32 to vector<2x128xf32>
    %16 = arith.addf %15, %14 : vector<2x128xf32>
    %17 = arith.divf %15, %16 : vector<2x128xf32>
    %cst_12 = arith.constant 1.000000e+00 : f32
    %18 = vector.broadcast %cst_12 : f32 to vector<2x128xf32>
    %19 = arith.subf %18, %17 : vector<2x128xf32>
    %cst_13 = arith.constant 9.99999968E-21 : f32
    %cst_14 = arith.constant 1.000000e+00 : f32
    %20 = vector.broadcast %cst_13 : f32 to vector<2x128xf32>
    %21 = arith.maximumf %20, %19 : vector<2x128xf32>
    %22 = vector.broadcast %cst_14 : f32 to vector<2x128xf32>
    %23 = arith.minimumf %22, %21 : vector<2x128xf32>
    %24 = math.log %23 : vector<2x128xf32>
    %cst_15 = arith.constant dense<0.000000e+00> : vector<2x128xf32>
    %25 = tpu.matmul %24, %4, %cst_15 {dimension_numbers = #tpu.dot_dimension_numbers<[1], [0], [0], [1], [0, 0, 1, 1], [], []>, precision = #tpu.contract_precision<fp32>} : vector<2x128xf32>, vector<128x128xf32>, vector<2x128xf32> -> vector<2x128xf32>
    %26 = math.exp %25 : vector<2x128xf32>
    %cst_16 = arith.constant 1.000000e-10 : f32
    %cst_17 = arith.constant 1.000000e+00 : f32
    %27 = vector.broadcast %cst_16 : f32 to vector<2x128xf32>
    %28 = arith.maximumf %27, %26 : vector<2x128xf32>
    %29 = vector.broadcast %cst_17 : f32 to vector<2x128xf32>
    %30 = arith.minimumf %29, %28 : vector<2x128xf32>
    %31 = arith.divf %2, %30 : vector<2x128xf32>
    %cst_18 = arith.constant dense<0.000000e+00> : vector<2x128xf32>
    %32 = tpu.matmul %31, %4, %cst_18 {dimension_numbers = #tpu.dot_dimension_numbers<[1], [0], [0], [1], [0, 0, 1, 1], [], []>, precision = #tpu.contract_precision<fp32>} : vector<2x128xf32>, vector<128x128xf32>, vector<2x128xf32> -> vector<2x128xf32>
    %33 = arith.addf %32, %31 : vector<2x128xf32>
    %34 = arith.mulf %17, %26 : vector<2x128xf32>
    %35 = arith.mulf %34, %33 : vector<2x128xf32>
    %c0_19 = arith.constant 0 : index
    %c0_20 = arith.constant 0 : index
    %36 = vector.load %arg8[%c0_19, %c0_20] : memref<2x128xf32, #tpu.memory_space<vmem>>, vector<2x128xf32>
    tpu.vector_store %arg8[%c0_19, %c0_20], %35 {strides = array<i32>} : memref<2x128xf32, #tpu.memory_space<vmem>>, vector<2x128xf32>,
    %c0_21 = arith.constant 0 : index
    %c0_22 = arith.constant 0 : index
    %c0_23 = arith.constant 0 : index
    %37 = vector.load %arg3[%c0_21, %c0_22, %c0_23] : memref<2x16x128xbf16, #tpu.memory_space<vmem>>, vector<2x16x128xbf16>
    %38 = vector.extract_strided_slice %35 {offsets = [0, 0], sizes = [2, 16], strides = [1, 1]} : vector<2x128xf32> to vector<2x16xf32>
    %39 = vector.shape_cast %38 : vector<2x16xf32> to vector<2x1x16xf32>
    %40 = arith.truncf %39 : vector<2x1x16xf32> to vector<2x1x16xbf16>
    "tpu.trace_start"() <{level = 10 : i32, message = "nqt,nte->nqe"}> : () -> ()
    %cst_24 = arith.constant dense<0.000000e+00> : vector<2x1x128xf32>
    %41 = tpu.matmul %40, %37, %cst_24 {dimension_numbers = #tpu.dot_dimension_numbers<[2], [1], [1], [2], [0, 0, 0, 1, 1, 2], [0], [0]>} : vector<2x1x16xbf16>, vector<2x16x128xbf16>, vector<2x1x128xf32> -> vector<2x1x128xf32>
    "tpu.trace_stop"() : () -> ()
    %42 = vector.shape_cast %41 : vector<2x1x128xf32> to vector<2x128xf32>
    %c0_25 = arith.constant 0 : index
    %c0_26 = arith.constant 0 : index
    %43 = vector.load %arg7[%c0_25, %c0_26] : memref<2x128xf32, #tpu.memory_space<vmem>>, vector<2x128xf32>
    tpu.vector_store %arg7[%c0_25, %c0_26], %42 {strides = array<i32>} : memref<2x128xf32, #tpu.memory_space<vmem>>, vector<2x128xf32>,
    return
  }
  func.func @transform_0(%arg0: i32) -> (i32, i32, i32) {
    %c0_i32 = arith.constant 0 : i32
    %c0_i32_0 = arith.constant 0 : i32
    %c0_i32_1 = arith.constant 0 : i32
    return %arg0, %c0_i32, %c0_i32_0 : i32, i32, i32
  }
  func.func @transform_1(%arg0: i32) -> (i32, i32, i32) {
    %c0_i32 = arith.constant 0 : i32
    %c0_i32_0 = arith.constant 0 : i32
    %c0_i32_1 = arith.constant 0 : i32
    return %arg0, %c0_i32, %c0_i32_0 : i32, i32, i32
  }
  func.func @transform_2(%arg0: i32) -> (i32, i32, i32) {
    %c0_i32 = arith.constant 0 : i32
    %c0_i32_0 = arith.constant 0 : i32
    %c0_i32_1 = arith.constant 0 : i32
    return %arg0, %c0_i32, %c0_i32_0 : i32, i32, i32
  }
  func.func @transform_3(%arg0: i32) -> (i32, i32) {
    %c0_i32 = arith.constant 0 : i32
    %c0_i32_0 = arith.constant 0 : i32
    return %arg0, %c0_i32 : i32, i32
  }
  func.func @transform_4(%arg0: i32) -> (i32, i32) {
    %c0_i32 = arith.constant 0 : i32
    %c0_i32_0 = arith.constant 0 : i32
    %c0_i32_1 = arith.constant 0 : i32
    return %c0_i32, %c0_i32_0 : i32, i32
  }
  func.func @transform_5(%arg0: i32) -> (i32, i32) {
    %c0_i32 = arith.constant 0 : i32
    %c0_i32_0 = arith.constant 0 : i32
    %c0_i32_1 = arith.constant 0 : i32
    return %c0_i32, %c0_i32_0 : i32, i32
  }
  func.func @transform_6(%arg0: i32) -> (i32, i32) {
    %c0_i32 = arith.constant 0 : i32
    %c0_i32_0 = arith.constant 0 : i32
    return %arg0, %c0_i32 : i32, i32
  }
  func.func @transform_7(%arg0: i32) -> (i32, i32) {
    %c0_i32 = arith.constant 0 : i32
    %c0_i32_0 = arith.constant 0 : i32
    return %arg0, %c0_i32 : i32, i32
  }
}

</mosaic_0001>

<llo_original>
// kernel: tpu_custom_call.1
$region0: #{tpu_custom_call.1}
  #allocation0 [shape = 'u32[]', space=smem, size = 0x4, offset = 0x4, fixed_abs, tag = 'smem constant byte address 0x4 - core index']
  #allocation1 [shape = 'u32[72,128]{1,0:T(1,128)}', space=vmem, size = 0x9000, scoped, tag = 'internal scratch']
  %s0 = inlined_call_operand.vmem [shape: f32[2,32,1], index: 0, kind: input, shape index: {}]
  %s1 = inlined_call_operand.vmem [shape: bf16[2,32,128], index: 1, kind: input, shape index: {}]
  %s2 = inlined_call_operand.vmem [shape: bf16[2,16,128], index: 2, kind: input, shape index: {}]
  %s3 = inlined_call_operand.vmem [shape: f32[2,128], index: 3, kind: input, shape index: {}]
  %s4 = inlined_call_operand.vmem [shape: f32[32,1], index: 4, kind: input, shape index: {}]
  %s5 = inlined_call_operand.hbm [shape: f32[128,128], index: 5, kind: input, shape index: {}]
  %s6 = inlined_call_operand.hbm [shape: f32[2,128], index: 6, kind: output, shape index: {0}]
  %s7 = inlined_call_operand.hbm [shape: f32[2,128], index: 7, kind: output, shape index: {1}]
  %8 = xla_tuple %s6, %s7
  %s9 = sld [smem:[#allocation0]]
  $region46: #{tpu_custom_call.1} parent=0
    _
  %s11 = ssub.s32 1, %s9
  %s12 = scalar_select 0, %s11, %s9
  $region1: #{tpu_custom_call.1} parent=0
    #allocation2 [shape = 'u8[65536]{0}', space=vmem, size = 0x10000, scoped, tag = 'input window, operand 5, single buffered']
    #allocation3 [shape = 's32[1]{0}', space=sflag, size = 0x4, scoped, tag = 'scoped memory for tpu_custom_call.1']
    #allocation4 [shape = 's32[1]{0}', space=sflag, size = 0x4, scoped, tag = 'scoped memory for tpu_custom_call.1']
    #allocation5 [shape = 'u8[1024]{0}', space=vmem, size = 0x400, scoped, tag = 'output window, operand 0, single buffered']
    #allocation6 [shape = 'u8[1024]{0}', space=vmem, size = 0x400, scoped, tag = 'output window, operand 1, single buffered']
    #allocation7 [shape = 's32[1]{0}', space=sflag, size = 0x4, scoped, tag = 'scoped memory for tpu_custom_call.1']
    %13 = vsyncpa [#allocation3], 0
    %14 = vsyncpa [#allocation4], 0
    %15 = vsyncpa [#allocation7], 0
    // Predicated region
    $region2: #{tpu_custom_call.1} parent=1 // pred_check
      _
    $region3: #{tpu_custom_call.1} parent=1 // pred_check_branch
      %17 = sbr.rel (0) target = $region5
    $region4: #{tpu_custom_call.1} parent=1 // pred_region
      _
    $region5: #{tpu_custom_call.1} parent=1 // pred_fallthru
      _
    // Predicated region
    $region6: #{tpu_custom_call.1} parent=1 // pred_check
      _
    $region7: #{tpu_custom_call.1} parent=1 // pred_check_branch
      %19 = sbr.rel (0) target = $region9
    $region8: #{tpu_custom_call.1} parent=1 // pred_region
      _
    $region9: #{tpu_custom_call.1} parent=1 // pred_fallthru
      _
    // Predicated region
    $region10: #{tpu_custom_call.1} parent=1 // pred_check
      _
    $region11: #{tpu_custom_call.1} parent=1 // pred_check_branch
      %21 = sbr.rel (0) target = $region13
    $region12: #{tpu_custom_call.1} parent=1 // pred_region
      _
    $region13: #{tpu_custom_call.1} parent=1 // pred_fallthru
      _
    // Predicated region
    $region14: #{tpu_custom_call.1} parent=1 // pred_check
      _
    $region15: #{tpu_custom_call.1} parent=1 // pred_check_branch
      %23 = sbr.rel (0) target = $region17
    $region16: #{tpu_custom_call.1} parent=1 // pred_region
      _
    $region17: #{tpu_custom_call.1} parent=1 // pred_fallthru
      _
    // Predicated region
    $region18: #{tpu_custom_call.1} parent=1 // pred_check
      _
    $region19: #{tpu_custom_call.1} parent=1 // pred_check_branch
      %25 = sbr.rel (0) target = $region21
    $region20: #{tpu_custom_call.1} parent=1 // pred_region
      _
    $region21: #{tpu_custom_call.1} parent=1 // pred_fallthru
      _
    // Predicated region
    $region22: #{tpu_custom_call.1} parent=1 // pred_check
      _
    $region23: #{tpu_custom_call.1} parent=1 // pred_check_branch
      %27 = sbr.rel (0) target = $region25
    $region24: #{tpu_custom_call.1} parent=1 // pred_region
      %29 = vsyncadd [#allocation3], 0
      %s30 = sshll.u32 %s5, 4
      %s31 = int_to_ptr.hbm [resolvable:$true] %s30
      %s32 = sshll.u32 [#allocation2], 4
      %s33 = int_to_ptr.vmem [resolvable:$true] %s32
      %38 = dma.hbm_to_vmem [thread:$0]  %s31, 2048, %s33, [#allocation3], 128, 128, 8
    $region25: #{tpu_custom_call.1} parent=1 // pred_fallthru
      _
    // Predicated region
    $region26: #{tpu_custom_call.1} parent=1 // pred_check
      _
    $region27: #{tpu_custom_call.1} parent=1 // pred_check_branch
      %40 = sbr.rel (0) target = $region29
    $region28: #{tpu_custom_call.1} parent=1 // pred_region
      %42 = dma.done [#allocation3], 2048
    $region29: #{tpu_custom_call.1} parent=1 // pred_fallthru
      _
    %v44 = vld [vmem:[%s0] sm:$0xff]
    %v45 = vld [vmem:[%s0 + $0x8] sm:$0xff]
    %v46 = vld [vmem:[%s0 + $0x10] sm:$0xff]
    %v47 = vld [vmem:[%s0 + $0x18] sm:$0xff]
    %v48 = vld [vmem:[%s0 + $0x20] sm:$0xff]
    %v49 = vld [vmem:[%s0 + $0x28] sm:$0xff]
    %v50 = vld [vmem:[%s0 + $0x30] sm:$0xff]
    %v51 = vld [vmem:[%s0 + $0x38] sm:$0xff]
    %v52 = vld [vmem:[%s1] sm:$0xf]
    %v53 = vld [vmem:[%s1 + $0x4] sm:$0xf]
    %v54 = vld [vmem:[%s1 + $0x8] sm:$0xf]
    %v55 = vld [vmem:[%s1 + $0xc] sm:$0xf]
    %v56 = vld [vmem:[%s1 + $0x10] sm:$0xf]
    %v57 = vld [vmem:[%s1 + $0x14] sm:$0xf]
    %v58 = vld [vmem:[%s1 + $0x18] sm:$0xf]
    %v59 = vld [vmem:[%s1 + $0x1c] sm:$0xf]
    %v60 = vld [vmem:[%s3] sm:$0x3]
    %v61 = vld [vmem:[%s4] sm:$0xff]
    %v62 = vld [vmem:[%s4 + $0x8] sm:$0xff]
    %v63 = vld [vmem:[%s4 + $0x10] sm:$0xff]
    %v64 = vld [vmem:[%s4 + $0x18] sm:$0xff]
    %v65 = vld [vmem:[#allocation2] sm:$0xff]
    %v66 = vld [vmem:[#allocation2 + $0x8] sm:$0xff]
    %v67 = vld [vmem:[#allocation2 + $0x10] sm:$0xff]
    %v68 = vld [vmem:[#allocation2 + $0x18] sm:$0xff]
    %v69 = vld [vmem:[#allocation2 + $0x20] sm:$0xff]
    %v70 = vld [vmem:[#allocation2 + $0x28] sm:$0xff]
    %v71 = vld [vmem:[#allocation2 + $0x30] sm:$0xff]
    %v72 = vld [vmem:[#allocation2 + $0x38] sm:$0xff]
    %v73 = vld [vmem:[#allocation2 + $0x40] sm:$0xff]
    %v74 = vld [vmem:[#allocation2 + $0x48] sm:$0xff]
    %v75 = vld [vmem:[#allocation2 + $0x50] sm:$0xff]
    %v76 = vld [vmem:[#allocation2 + $0x58] sm:$0xff]
    %v77 = vld [vmem:[#allocation2 + $0x60] sm:$0xff]
    %v78 = vld [vmem:[#allocation2 + $0x68] sm:$0xff]
    %v79 = vld [vmem:[#allocation2 + $0x70] sm:$0xff]
    %v80 = vld [vmem:[#allocation2 + $0x78] sm:$0xff]
    %v81 = vunpack.c.l.bf16 %v52
    %v82 = vunpack.c.l.bf16 %v53
    %v83 = vunpack.c.l.bf16 %v54
    %v84 = vunpack.c.l.bf16 %v55
    %v85 = vunpack.c.l.bf16 %v56
    %v86 = vunpack.c.l.bf16 %v57
    %v87 = vunpack.c.l.bf16 %v58
    %v88 = vunpack.c.l.bf16 %v59
    %90 = vset.pattern.permute.xlu0 0
    %91 = vperm.xlu0 %90, %v44
    %v92 = vpop.permute.xlu0 %91
    %95 = vset.pattern.permute.xlu0 0
    %96 = vperm.xlu0 %95, %v45
    %v97 = vpop.permute.xlu0 %96
    %100 = vset.pattern.permute.xlu0 0
    %101 = vperm.xlu0 %100, %v46
    %v102 = vpop.permute.xlu0 %101
    %105 = vset.pattern.permute.xlu0 0
    %106 = vperm.xlu0 %105, %v47
    %v107 = vpop.permute.xlu0 %106
    %110 = vset.pattern.permute.xlu0 0
    %111 = vperm.xlu0 %110, %v48
    %v112 = vpop.permute.xlu0 %111
    %115 = vset.pattern.permute.xlu0 0
    %116 = vperm.xlu0 %115, %v49
    %v117 = vpop.permute.xlu0 %116
    %120 = vset.pattern.permute.xlu0 0
    %121 = vperm.xlu0 %120, %v50
    %v122 = vpop.permute.xlu0 %121
    %125 = vset.pattern.permute.xlu0 0
    %126 = vperm.xlu0 %125, %v51
    %v127 = vpop.permute.xlu0 %126
    %v129 = vadd.f32 %v92, %v81
    %v130 = vadd.f32 %v97, %v82
    %v131 = vadd.f32 %v102, %v83
    %v132 = vadd.f32 %v107, %v84
    %v133 = vadd.f32 %v112, %v85
    %v134 = vadd.f32 %v117, %v86
    %v135 = vadd.f32 %v122, %v87
    %v136 = vadd.f32 %v127, %v88
    %v137 = vtanh.pop %v129
    %v138 = vtanh.pop %v130
    %v139 = vtanh.pop %v131
    %v140 = vtanh.pop %v132
    %v141 = vtanh.pop %v133
    %v142 = vtanh.pop %v134
    %v143 = vtanh.pop %v135
    %v144 = vtanh.pop %v136
    %146 = vset.pattern.permute.xlu0 0
    %147 = vperm.xlu0 %146, %v61
    %v148 = vpop.permute.xlu0 %147
    %151 = vset.pattern.permute.xlu0 0
    %152 = vperm.xlu0 %151, %v62
    %v153 = vpop.permute.xlu0 %152
    %156 = vset.pattern.permute.xlu0 0
    %157 = vperm.xlu0 %156, %v63
    %v158 = vpop.permute.xlu0 %157
    %161 = vset.pattern.permute.xlu0 0
    %162 = vperm.xlu0 %161, %v64
    %v163 = vpop.permute.xlu0 %162
    %v165 = vmul.f32 %v137, %v148
    %v166 = vmul.f32 %v138, %v153
    %v167 = vmul.f32 %v139, %v158
    %v168 = vmul.f32 %v140, %v163
    %v169 = vmul.f32 %v141, %v148
    %v170 = vmul.f32 %v142, %v153
    %v171 = vmul.f32 %v143, %v158
    %v172 = vmul.f32 %v144, %v163
    %v173 = vadd.f32 %v165, %v166
    %v174 = vadd.f32 %v173, %v167
    %v175 = vadd.f32 %v174, %v168
    %v176 = vrot.slane %v175, 4
    %v177 = vadd.f32 %v175, %v176
    %v178 = vrot.slane %v177, 2
    %v179 = vadd.f32 %v177, %v178
    %v180 = vrot.slane %v179, 1
    %v181 = vadd.f32 %v179, %v180
    %v182 = vadd.f32 %v169, %v170
    %v183 = vadd.f32 %v182, %v171
    %v184 = vadd.f32 %v183, %v172
    %v185 = vrot.slane %v184, 4
    %v186 = vadd.f32 %v184, %v185
    %v187 = vrot.slane %v186, 2
    %v188 = vadd.f32 %v186, %v187
    %v189 = vrot.slane %v188, 1
    %v190 = vadd.f32 %v188, %v189
    %v191 = vxor.u32 %v181, 2147483648
    %v192 = vxor.u32 %v190, 2147483648
    %v193 = vmul.f32 %v191, 1.442695
    %v194 = vpow.pop %v193
    %v195 = vmul.f32 %v192, 1.442695
    %v196 = vpow.pop %v195
    %v197 = vadd.f32 %v194, 1.0
    %v198 = vadd.f32 %v196, 1.0
    %v199 = vrcp.pop %v197
    %v200 = vmul.f32 %v197, %v199
    %v201 = vsub.f32 1.0, %v200
    %v202 = vmul.f32 %v199, %v201
    %v203 = vadd.f32 %v199, %v202
    %vm204 = vweird.f32 %v197
    %vm205 = vweird.f32 %v199
    %vm206 = vmor %vm204, %vm205
    %v207 = vsel %vm206, %v199, %v203
    %v208 = vand.u32 2147483647, %v197
    %vm209 = vcmp.eq.f32.partialorder %v208, 8.507059e+37
    %v210 = vand.u32 %v197, 2147483648
    %v211 = vor.u32 1.1754944e-38, %v210
    %v212 = vsel %vm209, %v211, %v207
    %v213 = vmul.f32 1.0, %v212
    %v214 = vrcp.pop %v198
    %v215 = vmul.f32 %v198, %v214
    %v216 = vsub.f32 1.0, %v215
    %v217 = vmul.f32 %v214, %v216
    %v218 = vadd.f32 %v214, %v217
    %vm219 = vweird.f32 %v198
    %vm220 = vweird.f32 %v214
    %vm221 = vmor %vm219, %vm220
    %v222 = vsel %vm221, %v214, %v218
    %v223 = vand.u32 2147483647, %v198
    %vm224 = vcmp.eq.f32.partialorder %v223, 8.507059e+37
    %v225 = vand.u32 %v198, 2147483648
    %v226 = vor.u32 1.1754944e-38, %v225
    %v227 = vsel %vm224, %v226, %v222
    %v228 = vmul.f32 1.0, %v227
    %v229 = vsub.f32 1.0, %v213
    %v230 = vsub.f32 1.0, %v228
    %v231 = vmax.f32 %v229, 1e-20
    %v232 = vmax.f32 %v230, 1e-20
    %v233 = vmin.f32 %v231, 1.0
    %v234 = vmin.f32 %v232, 1.0
    %v235 = vlog2.pop %v233
    %v236 = vmul.f32 %v235, 0.6931472
    %v237 = vlog2.pop %v234
    %v238 = vmul.f32 %v237, 0.6931472
    %vm241 = vcmask 1041409
    %v242 = vsel %vm241, %v238, %v236
    %v244 = vand.u32 %v80, 4294901760
    %245 = vmatpush.msra.mxu0 %v244
    %v246 = vand.u32 %v79, 4294901760
    %247 = vmatpush.msra.mxu0 %v246
    %v248 = vand.u32 %v78, 4294901760
    %249 = vmatpush.msra.mxu0 %v248
    %v250 = vand.u32 %v77, 4294901760
    %251 = vmatpush.msra.mxu0 %v250
    %v252 = vand.u32 %v76, 4294901760
    %253 = vmatpush.msra.mxu0 %v252
    %v254 = vand.u32 %v75, 4294901760
    %255 = vmatpush.msra.mxu0 %v254
    %v256 = vand.u32 %v74, 4294901760
    %257 = vmatpush.msra.mxu0 %v256
    %v258 = vand.u32 %v73, 4294901760
    %259 = vmatpush.msra.mxu0 %v258
    %v260 = vand.u32 %v72, 4294901760
    %261 = vmatpush.msra.mxu0 %v260
    %v262 = vand.u32 %v71, 4294901760
    %263 = vmatpush.msra.mxu0 %v262
    %v264 = vand.u32 %v70, 4294901760
    %265 = vmatpush.msra.mxu0 %v264
    %v266 = vand.u32 %v69, 4294901760
    %267 = vmatpush.msra.mxu0 %v266
    %v268 = vand.u32 %v68, 4294901760
    %269 = vmatpush.msra.mxu0 %v268
    %v270 = vand.u32 %v67, 4294901760
    %271 = vmatpush.msra.mxu0 %v270
    %v272 = vand.u32 %v66, 4294901760
    %273 = vmatpush.msra.mxu0 %v272
    %v274 = vand.u32 %v65, 4294901760
    %275 = vmatpush.msra.mxu0 %v274
    %v276 = vand.u32 %v242, 4294901760
    %v277 = vsub.f32 %v242, %v276
    %v278 = vand.u32 %v277, 4294901760
    %v279 = vsub.f32 %v277, %v278
    %v280 = vand.u32 %v279, 4294901760
    %281 = vmatmul.f32.gmra.mxu0 %v280
    %v282 = vpop.f32.mrf.mxu0
    %v283 = vadd.f32 0.0, %v282
    %284 = vdwg.mxu0
    %v285 = vand.u32 %v80, 4294901760
    %v286 = vsub.f32 %v80, %v285
    %v287 = vand.u32 %v286, 4294901760
    %v288 = vsub.f32 %v286, %v287
    %v289 = vand.u32 %v288, 4294901760
    %290 = vmatpush.msra.mxu0 %v289
    %v291 = vand.u32 %v79, 4294901760
    %v292 = vsub.f32 %v79, %v291
    %v293 = vand.u32 %v292, 4294901760
    %v294 = vsub.f32 %v292, %v293
    %v295 = vand.u32 %v294, 4294901760
    %296 = vmatpush.msra.mxu0 %v295
    %v297 = vand.u32 %v78, 4294901760
    %v298 = vsub.f32 %v78, %v297
    %v299 = vand.u32 %v298, 4294901760
    %v300 = vsub.f32 %v298, %v299
    %v301 = vand.u32 %v300, 4294901760
    %302 = vmatpush.msra.mxu0 %v301
    %v303 = vand.u32 %v77, 4294901760
    %v304 = vsub.f32 %v77, %v303
    %v305 = vand.u32 %v304, 4294901760
    %v306 = vsub.f32 %v304, %v305
    %v307 = vand.u32 %v306, 4294901760
    %308 = vmatpush.msra.mxu0 %v307
    %v309 = vand.u32 %v76, 4294901760
    %v310 = vsub.f32 %v76, %v309
    %v311 = vand.u32 %v310, 4294901760
    %v312 = vsub.f32 %v310, %v311
    %v313 = vand.u32 %v312, 4294901760
    %314 = vmatpush.msra.mxu0 %v313
    %v315 = vand.u32 %v75, 4294901760
    %v316 = vsub.f32 %v75, %v315
    %v317 = vand.u32 %v316, 4294901760
    %v318 = vsub.f32 %v316, %v317
    %v319 = vand.u32 %v318, 4294901760
    %320 = vmatpush.msra.mxu0 %v319
    %v321 = vand.u32 %v74, 4294901760
    %v322 = vsub.f32 %v74, %v321
    %v323 = vand.u32 %v322, 4294901760
    %v324 = vsub.f32 %v322, %v323
    %v325 = vand.u32 %v324, 4294901760
    %326 = vmatpush.msra.mxu0 %v325
    %v327 = vand.u32 %v73, 4294901760
    %v328 = vsub.f32 %v73, %v327
    %v329 = vand.u32 %v328, 4294901760
    %v330 = vsub.f32 %v328, %v329
    %v331 = vand.u32 %v330, 4294901760
    %332 = vmatpush.msra.mxu0 %v331
    %v333 = vand.u32 %v72, 4294901760
    %v334 = vsub.f32 %v72, %v333
    %v335 = vand.u32 %v334, 4294901760
    %v336 = vsub.f32 %v334, %v335
    %v337 = vand.u32 %v336, 4294901760
    %338 = vmatpush.msra.mxu0 %v337
    %v339 = vand.u32 %v71, 4294901760
    %v340 = vsub.f32 %v71, %v339
    %v341 = vand.u32 %v340, 4294901760
    %v342 = vsub.f32 %v340, %v341
    %v343 = vand.u32 %v342, 4294901760
    %344 = vmatpush.msra.mxu0 %v343
    %v345 = vand.u32 %v70, 4294901760
    %v346 = vsub.f32 %v70, %v345
    %v347 = vand.u32 %v346, 4294901760
    %v348 = vsub.f32 %v346, %v347
    %v349 = vand.u32 %v348, 4294901760
    %350 = vmatpush.msra.mxu0 %v349
    %v351 = vand.u32 %v69, 4294901760
    %v352 = vsub.f32 %v69, %v351
    %v353 = vand.u32 %v352, 4294901760
    %v354 = vsub.f32 %v352, %v353
    %v355 = vand.u32 %v354, 4294901760
    %356 = vmatpush.msra.mxu0 %v355
    %v357 = vand.u32 %v68, 4294901760
    %v358 = vsub.f32 %v68, %v357
    %v359 = vand.u32 %v358, 4294901760
    %v360 = vsub.f32 %v358, %v359
    %v361 = vand.u32 %v360, 4294901760
    %362 = vmatpush.msra.mxu0 %v361
    %v363 = vand.u32 %v67, 4294901760
    %v364 = vsub.f32 %v67, %v363
    %v365 = vand.u32 %v364, 4294901760
    %v366 = vsub.f32 %v364, %v365
    %v367 = vand.u32 %v366, 4294901760
    %368 = vmatpush.msra.mxu0 %v367
    %v369 = vand.u32 %v66, 4294901760
    %v370 = vsub.f32 %v66, %v369
    %v371 = vand.u32 %v370, 4294901760
    %v372 = vsub.f32 %v370, %v371
    %v373 = vand.u32 %v372, 4294901760
    %374 = vmatpush.msra.mxu0 %v373
    %v375 = vand.u32 %v65, 4294901760
    %v376 = vsub.f32 %v65, %v375
    %v377 = vand.u32 %v376, 4294901760
    %v378 = vsub.f32 %v376, %v377
    %v379 = vand.u32 %v378, 4294901760
    %380 = vmatpush.msra.mxu0 %v379
    %v381 = vand.u32 %v242, 4294901760
    %382 = vmatmul.f32.gmra.mxu0 %v381
    %v383 = vpop.f32.mrf.mxu0
    %v384 = vadd.f32 %v283, %v383
    %385 = vdwg.mxu0
    %v386 = vand.u32 %v80, 4294901760
    %v387 = vsub.f32 %v80, %v386
    %388 = vmatpush.msra.mxu0 %v387
    %v389 = vand.u32 %v79, 4294901760
    %v390 = vsub.f32 %v79, %v389
    %391 = vmatpush.msra.mxu0 %v390
    %v392 = vand.u32 %v78, 4294901760
    %v393 = vsub.f32 %v78, %v392
    %394 = vmatpush.msra.mxu0 %v393
    %v395 = vand.u32 %v77, 4294901760
    %v396 = vsub.f32 %v77, %v395
    %397 = vmatpush.msra.mxu0 %v396
    %v398 = vand.u32 %v76, 4294901760
    %v399 = vsub.f32 %v76, %v398
    %400 = vmatpush.msra.mxu0 %v399
    %v401 = vand.u32 %v75, 4294901760
    %v402 = vsub.f32 %v75, %v401
    %403 = vmatpush.msra.mxu0 %v402
    %v404 = vand.u32 %v74, 4294901760
    %v405 = vsub.f32 %v74, %v404
    %406 = vmatpush.msra.mxu0 %v405
    %v407 = vand.u32 %v73, 4294901760
    %v408 = vsub.f32 %v73, %v407
    %409 = vmatpush.msra.mxu0 %v408
    %v410 = vand.u32 %v72, 4294901760
    %v411 = vsub.f32 %v72, %v410
    %412 = vmatpush.msra.mxu0 %v411
    %v413 = vand.u32 %v71, 4294901760
    %v414 = vsub.f32 %v71, %v413
    %415 = vmatpush.msra.mxu0 %v414
    %v416 = vand.u32 %v70, 4294901760
    %v417 = vsub.f32 %v70, %v416
    %418 = vmatpush.msra.mxu0 %v417
    %v419 = vand.u32 %v69, 4294901760
    %v420 = vsub.f32 %v69, %v419
    %421 = vmatpush.msra.mxu0 %v420
    %v422 = vand.u32 %v68, 4294901760
    %v423 = vsub.f32 %v68, %v422
    %424 = vmatpush.msra.mxu0 %v423
    %v425 = vand.u32 %v67, 4294901760
    %v426 = vsub.f32 %v67, %v425
    %427 = vmatpush.msra.mxu0 %v426
    %v428 = vand.u32 %v66, 4294901760
    %v429 = vsub.f32 %v66, %v428
    %430 = vmatpush.msra.mxu0 %v429
    %v431 = vand.u32 %v65, 4294901760
    %v432 = vsub.f32 %v65, %v431
    %433 = vmatpush.msra.mxu0 %v432
    %v434 = vand.u32 %v242, 4294901760
    %v435 = vsub.f32 %v242, %v434
    %436 = vmatmul.f32.gmra.mxu0 %v435
    %v437 = vpop.f32.mrf.mxu0
    %v438 = vadd.f32 %v384, %v437
    %439 = vdwg.mxu0
    %v440 = vand.u32 %v80, 4294901760
    %441 = vmatpush.msra.mxu0 %v440
    %v442 = vand.u32 %v79, 4294901760
    %443 = vmatpush.msra.mxu0 %v442
    %v444 = vand.u32 %v78, 4294901760
    %445 = vmatpush.msra.mxu0 %v444
    %v446 = vand.u32 %v77, 4294901760
    %447 = vmatpush.msra.mxu0 %v446
    %v448 = vand.u32 %v76, 4294901760
    %449 = vmatpush.msra.mxu0 %v448
    %v450 = vand.u32 %v75, 4294901760
    %451 = vmatpush.msra.mxu0 %v450
    %v452 = vand.u32 %v74, 4294901760
    %453 = vmatpush.msra.mxu0 %v452
    %v454 = vand.u32 %v73, 4294901760
    %455 = vmatpush.msra.mxu0 %v454
    %v456 = vand.u32 %v72, 4294901760
    %457 = vmatpush.msra.mxu0 %v456
    %v458 = vand.u32 %v71, 4294901760
    %459 = vmatpush.msra.mxu0 %v458
    %v460 = vand.u32 %v70, 4294901760
    %461 = vmatpush.msra.mxu0 %v460
    %v462 = vand.u32 %v69, 4294901760
    %463 = vmatpush.msra.mxu0 %v462
    %v464 = vand.u32 %v68, 4294901760
    %465 = vmatpush.msra.mxu0 %v464
    %v466 = vand.u32 %v67, 4294901760
    %467 = vmatpush.msra.mxu0 %v466
    %v468 = vand.u32 %v66, 4294901760
    %469 = vmatpush.msra.mxu0 %v468
    %v470 = vand.u32 %v65, 4294901760
    %471 = vmatpush.msra.mxu0 %v470
    %v472 = vand.u32 %v242, 4294901760
    %v473 = vsub.f32 %v242, %v472
    %v474 = vand.u32 %v473, 4294901760
    %475 = vmatmul.f32.gmra.mxu0 %v474
    %v476 = vpop.f32.mrf.mxu0
    %v477 = vadd.f32 %v438, %v476
    %478 = vdwg.mxu0
    %v479 = vand.u32 %v80, 4294901760
    %v480 = vsub.f32 %v80, %v479
    %v481 = vand.u32 %v480, 4294901760
    %482 = vmatpush.msra.mxu0 %v481
    %v483 = vand.u32 %v79, 4294901760
    %v484 = vsub.f32 %v79, %v483
    %v485 = vand.u32 %v484, 4294901760
    %486 = vmatpush.msra.mxu0 %v485
    %v487 = vand.u32 %v78, 4294901760
    %v488 = vsub.f32 %v78, %v487
    %v489 = vand.u32 %v488, 4294901760
    %490 = vmatpush.msra.mxu0 %v489
    %v491 = vand.u32 %v77, 4294901760
    %v492 = vsub.f32 %v77, %v491
    %v493 = vand.u32 %v492, 4294901760
    %494 = vmatpush.msra.mxu0 %v493
    %v495 = vand.u32 %v76, 4294901760
    %v496 = vsub.f32 %v76, %v495
    %v497 = vand.u32 %v496, 4294901760
    %498 = vmatpush.msra.mxu0 %v497
    %v499 = vand.u32 %v75, 4294901760
    %v500 = vsub.f32 %v75, %v499
    %v501 = vand.u32 %v500, 4294901760
    %502 = vmatpush.msra.mxu0 %v501
    %v503 = vand.u32 %v74, 4294901760
    %v504 = vsub.f32 %v74, %v503
    %v505 = vand.u32 %v504, 4294901760
    %506 = vmatpush.msra.mxu0 %v505
    %v507 = vand.u32 %v73, 4294901760
    %v508 = vsub.f32 %v73, %v507
    %v509 = vand.u32 %v508, 4294901760
    %510 = vmatpush.msra.mxu0 %v509
    %v511 = vand.u32 %v72, 4294901760
    %v512 = vsub.f32 %v72, %v511
    %v513 = vand.u32 %v512, 4294901760
    %514 = vmatpush.msra.mxu0 %v513
    %v515 = vand.u32 %v71, 4294901760
    %v516 = vsub.f32 %v71, %v515
    %v517 = vand.u32 %v516, 4294901760
    %518 = vmatpush.msra.mxu0 %v517
    %v519 = vand.u32 %v70, 4294901760
    %v520 = vsub.f32 %v70, %v519
    %v521 = vand.u32 %v520, 4294901760
    %522 = vmatpush.msra.mxu0 %v521
    %v523 = vand.u32 %v69, 4294901760
    %v524 = vsub.f32 %v69, %v523
    %v525 = vand.u32 %v524, 4294901760
    %526 = vmatpush.msra.mxu0 %v525
    %v527 = vand.u32 %v68, 4294901760
    %v528 = vsub.f32 %v68, %v527
    %v529 = vand.u32 %v528, 4294901760
    %530 = vmatpush.msra.mxu0 %v529
    %v531 = vand.u32 %v67, 4294901760
    %v532 = vsub.f32 %v67, %v531
    %v533 = vand.u32 %v532, 4294901760
    %534 = vmatpush.msra.mxu0 %v533
    %v535 = vand.u32 %v66, 4294901760
    %v536 = vsub.f32 %v66, %v535
    %v537 = vand.u32 %v536, 4294901760
    %538 = vmatpush.msra.mxu0 %v537
    %v539 = vand.u32 %v65, 4294901760
    %v540 = vsub.f32 %v65, %v539
    %v541 = vand.u32 %v540, 4294901760
    %542 = vmatpush.msra.mxu0 %v541
    %v543 = vand.u32 %v242, 4294901760
    %544 = vmatmul.f32.gmra.mxu0 %v543
    %v545 = vpop.f32.mrf.mxu0
    %v546 = vadd.f32 %v477, %v545
    %547 = vdwg.mxu0
    %v548 = vand.u32 %v80, 4294901760
    %549 = vmatpush.msra.mxu0 %v548
    %v550 = vand.u32 %v79, 4294901760
    %551 = vmatpush.msra.mxu0 %v550
    %v552 = vand.u32 %v78, 4294901760
    %553 = vmatpush.msra.mxu0 %v552
    %v554 = vand.u32 %v77, 4294901760
    %555 = vmatpush.msra.mxu0 %v554
    %v556 = vand.u32 %v76, 4294901760
    %557 = vmatpush.msra.mxu0 %v556
    %v558 = vand.u32 %v75, 4294901760
    %559 = vmatpush.msra.mxu0 %v558
    %v560 = vand.u32 %v74, 4294901760
    %561 = vmatpush.msra.mxu0 %v560
    %v562 = vand.u32 %v73, 4294901760
    %563 = vmatpush.msra.mxu0 %v562
    %v564 = vand.u32 %v72, 4294901760
    %565 = vmatpush.msra.mxu0 %v564
    %v566 = vand.u32 %v71, 4294901760
    %567 = vmatpush.msra.mxu0 %v566
    %v568 = vand.u32 %v70, 4294901760
    %569 = vmatpush.msra.mxu0 %v568
    %v570 = vand.u32 %v69, 4294901760
    %571 = vmatpush.msra.mxu0 %v570
    %v572 = vand.u32 %v68, 4294901760
    %573 = vmatpush.msra.mxu0 %v572
    %v574 = vand.u32 %v67, 4294901760
    %575 = vmatpush.msra.mxu0 %v574
    %v576 = vand.u32 %v66, 4294901760
    %577 = vmatpush.msra.mxu0 %v576
    %v578 = vand.u32 %v65, 4294901760
    %579 = vmatpush.msra.mxu0 %v578
    %v580 = vand.u32 %v242, 4294901760
    %581 = vmatmul.f32.gmra.mxu0 %v580
    %v582 = vpop.f32.mrf.mxu0
    %v583 = vadd.f32 %v546, %v582
    %584 = vdwg.mxu0
    %v585 = vmul.f32 %v583, 1.442695
    %v586 = vpow.pop %v585
    %v587 = vmax.f32 %v586, 1e-10
    %v588 = vmin.f32 %v587, 1.0
    %v589 = vrcp.pop %v588
    %v590 = vmul.f32 %v588, %v589
    %v591 = vsub.f32 1.0, %v590
    %v592 = vmul.f32 %v589, %v591
    %v593 = vadd.f32 %v589, %v592
    %vm594 = vweird.f32 %v588
    %vm595 = vweird.f32 %v589
    %vm596 = vmor %vm594, %vm595
    %v597 = vsel %vm596, %v589, %v593
    %v598 = vand.u32 2147483647, %v588
    %vm599 = vcmp.eq.f32.partialorder %v598, 8.507059e+37
    %v600 = vand.u32 %v588, 2147483648
    %v601 = vor.u32 1.1754944e-38, %v600
    %v602 = vsel %vm599, %v601, %v597
    %v603 = vmul.f32 %v60, %v602
    %v604 = vand.u32 %v80, 4294901760
    %605 = vmatpush.msra.mxu0 %v604
    %v606 = vand.u32 %v79, 4294901760
    %607 = vmatpush.msra.mxu0 %v606
    %v608 = vand.u32 %v78, 4294901760
    %609 = vmatpush.msra.mxu0 %v608
    %v610 = vand.u32 %v77, 4294901760
    %611 = vmatpush.msra.mxu0 %v610
    %v612 = vand.u32 %v76, 4294901760
    %613 = vmatpush.msra.mxu0 %v612
    %v614 = vand.u32 %v75, 4294901760
    %615 = vmatpush.msra.mxu0 %v614
    %v616 = vand.u32 %v74, 4294901760
    %617 = vmatpush.msra.mxu0 %v616
    %v618 = vand.u32 %v73, 4294901760
    %619 = vmatpush.msra.mxu0 %v618
    %v620 = vand.u32 %v72, 4294901760
    %621 = vmatpush.msra.mxu0 %v620
    %v622 = vand.u32 %v71, 4294901760
    %623 = vmatpush.msra.mxu0 %v622
    %v624 = vand.u32 %v70, 4294901760
    %625 = vmatpush.msra.mxu0 %v624
    %v626 = vand.u32 %v69, 4294901760
    %627 = vmatpush.msra.mxu0 %v626
    %v628 = vand.u32 %v68, 4294901760
    %629 = vmatpush.msra.mxu0 %v628
    %v630 = vand.u32 %v67, 4294901760
    %631 = vmatpush.msra.mxu0 %v630
    %v632 = vand.u32 %v66, 4294901760
    %633 = vmatpush.msra.mxu0 %v632
    %v634 = vand.u32 %v65, 4294901760
    %635 = vmatpush.msra.mxu0 %v634
    %v636 = vand.u32 %v603, 4294901760
    %v637 = vsub.f32 %v603, %v636
    %v638 = vand.u32 %v637, 4294901760
    %v639 = vsub.f32 %v637, %v638
    %v640 = vand.u32 %v639, 4294901760
    %641 = vmatmul.f32.gmra.mxu0 %v640
    %v642 = vpop.f32.mrf.mxu0
    %v643 = vadd.f32 %v603, %v642
    %644 = vdwg.mxu0
    %v645 = vand.u32 %v80, 4294901760
    %v646 = vsub.f32 %v80, %v645
    %v647 = vand.u32 %v646, 4294901760
    %v648 = vsub.f32 %v646, %v647
    %v649 = vand.u32 %v648, 4294901760
    %650 = vmatpush.msra.mxu0 %v649
    %v651 = vand.u32 %v79, 4294901760
    %v652 = vsub.f32 %v79, %v651
    %v653 = vand.u32 %v652, 4294901760
    %v654 = vsub.f32 %v652, %v653
    %v655 = vand.u32 %v654, 4294901760
    %656 = vmatpush.msra.mxu0 %v655
    %v657 = vand.u32 %v78, 4294901760
    %v658 = vsub.f32 %v78, %v657
    %v659 = vand.u32 %v658, 4294901760
    %v660 = vsub.f32 %v658, %v659
    %v661 = vand.u32 %v660, 4294901760
    %662 = vmatpush.msra.mxu0 %v661
    %v663 = vand.u32 %v77, 4294901760
    %v664 = vsub.f32 %v77, %v663
    %v665 = vand.u32 %v664, 4294901760
    %v666 = vsub.f32 %v664, %v665
    %v667 = vand.u32 %v666, 4294901760
    %668 = vmatpush.msra.mxu0 %v667
    %v669 = vand.u32 %v76, 4294901760
    %v670 = vsub.f32 %v76, %v669
    %v671 = vand.u32 %v670, 4294901760
    %v672 = vsub.f32 %v670, %v671
    %v673 = vand.u32 %v672, 4294901760
    %674 = vmatpush.msra.mxu0 %v673
    %v675 = vand.u32 %v75, 4294901760
    %v676 = vsub.f32 %v75, %v675
    %v677 = vand.u32 %v676, 4294901760
    %v678 = vsub.f32 %v676, %v677
    %v679 = vand.u32 %v678, 4294901760
    %680 = vmatpush.msra.mxu0 %v679
    %v681 = vand.u32 %v74, 4294901760
    %v682 = vsub.f32 %v74, %v681
    %v683 = vand.u32 %v682, 4294901760
    %v684 = vsub.f32 %v682, %v683
    %v685 = vand.u32 %v684, 4294901760
    %686 = vmatpush.msra.mxu0 %v685
    %v687 = vand.u32 %v73, 4294901760
    %v688 = vsub.f32 %v73, %v687
    %v689 = vand.u32 %v688, 4294901760
    %v690 = vsub.f32 %v688, %v689
    %v691 = vand.u32 %v690, 4294901760
    %692 = vmatpush.msra.mxu0 %v691
    %v693 = vand.u32 %v72, 4294901760
    %v694 = vsub.f32 %v72, %v693
    %v695 = vand.u32 %v694, 4294901760
    %v696 = vsub.f32 %v694, %v695
    %v697 = vand.u32 %v696, 4294901760
    %698 = vmatpush.msra.mxu0 %v697
    %v699 = vand.u32 %v71, 4294901760
    %v700 = vsub.f32 %v71, %v699
    %v701 = vand.u32 %v700, 4294901760
    %v702 = vsub.f32 %v700, %v701
    %v703 = vand.u32 %v702, 4294901760
    %704 = vmatpush.msra.mxu0 %v703
    %v705 = vand.u32 %v70, 4294901760
    %v706 = vsub.f32 %v70, %v705
    %v707 = vand.u32 %v706, 4294901760
    %v708 = vsub.f32 %v706, %v707
    %v709 = vand.u32 %v708, 4294901760
    %710 = vmatpush.msra.mxu0 %v709
    %v711 = vand.u32 %v69, 4294901760
    %v712 = vsub.f32 %v69, %v711
    %v713 = vand.u32 %v712, 4294901760
    %v714 = vsub.f32 %v712, %v713
    %v715 = vand.u32 %v714, 4294901760
    %716 = vmatpush.msra.mxu0 %v715
    %v717 = vand.u32 %v68, 4294901760
    %v718 = vsub.f32 %v68, %v717
    %v719 = vand.u32 %v718, 4294901760
    %v720 = vsub.f32 %v718, %v719
    %v721 = vand.u32 %v720, 4294901760
    %722 = vmatpush.msra.mxu0 %v721
    %v723 = vand.u32 %v67, 4294901760
    %v724 = vsub.f32 %v67, %v723
    %v725 = vand.u32 %v724, 4294901760
    %v726 = vsub.f32 %v724, %v725
    %v727 = vand.u32 %v726, 4294901760
    %728 = vmatpush.msra.mxu0 %v727
    %v729 = vand.u32 %v66, 4294901760
    %v730 = vsub.f32 %v66, %v729
    %v731 = vand.u32 %v730, 4294901760
    %v732 = vsub.f32 %v730, %v731
    %v733 = vand.u32 %v732, 4294901760
    %734 = vmatpush.msra.mxu0 %v733
    %v735 = vand.u32 %v65, 4294901760
    %v736 = vsub.f32 %v65, %v735
    %v737 = vand.u32 %v736, 4294901760
    %v738 = vsub.f32 %v736, %v737
    %v739 = vand.u32 %v738, 4294901760
    %740 = vmatpush.msra.mxu0 %v739
    %v741 = vand.u32 %v603, 4294901760
    %742 = vmatmul.f32.gmra.mxu0 %v741
    %v743 = vpop.f32.mrf.mxu0
    %v744 = vadd.f32 %v643, %v743
    %745 = vdwg.mxu0
    %v746 = vand.u32 %v80, 4294901760
    %v747 = vsub.f32 %v80, %v746
    %748 = vmatpush.msra.mxu0 %v747
    %v749 = vand.u32 %v79, 4294901760
    %v750 = vsub.f32 %v79, %v749
    %751 = vmatpush.msra.mxu0 %v750
    %v752 = vand.u32 %v78, 4294901760
    %v753 = vsub.f32 %v78, %v752
    %754 = vmatpush.msra.mxu0 %v753
    %v755 = vand.u32 %v77, 4294901760
    %v756 = vsub.f32 %v77, %v755
    %757 = vmatpush.msra.mxu0 %v756
    %v758 = vand.u32 %v76, 4294901760
    %v759 = vsub.f32 %v76, %v758
    %760 = vmatpush.msra.mxu0 %v759
    %v761 = vand.u32 %v75, 4294901760
    %v762 = vsub.f32 %v75, %v761
    %763 = vmatpush.msra.mxu0 %v762
    %v764 = vand.u32 %v74, 4294901760
    %v765 = vsub.f32 %v74, %v764
    %766 = vmatpush.msra.mxu0 %v765
    %v767 = vand.u32 %v73, 4294901760
    %v768 = vsub.f32 %v73, %v767
    %769 = vmatpush.msra.mxu0 %v768
    %v770 = vand.u32 %v72, 4294901760
    %v771 = vsub.f32 %v72, %v770
    %772 = vmatpush.msra.mxu0 %v771
    %v773 = vand.u32 %v71, 4294901760
    %v774 = vsub.f32 %v71, %v773
    %775 = vmatpush.msra.mxu0 %v774
    %v776 = vand.u32 %v70, 4294901760
    %v777 = vsub.f32 %v70, %v776
    %778 = vmatpush.msra.mxu0 %v777
    %v779 = vand.u32 %v69, 4294901760
    %v780 = vsub.f32 %v69, %v779
    %781 = vmatpush.msra.mxu0 %v780
    %v782 = vand.u32 %v68, 4294901760
    %v783 = vsub.f32 %v68, %v782
    %784 = vmatpush.msra.mxu0 %v783
    %v785 = vand.u32 %v67, 4294901760
    %v786 = vsub.f32 %v67, %v785
    %787 = vmatpush.msra.mxu0 %v786
    %v788 = vand.u32 %v66, 4294901760
    %v789 = vsub.f32 %v66, %v788
    %790 = vmatpush.msra.mxu0 %v789
    %v791 = vand.u32 %v65, 4294901760
    %v792 = vsub.f32 %v65, %v791
    %793 = vmatpush.msra.mxu0 %v792
    %v794 = vand.u32 %v603, 4294901760
    %v795 = vsub.f32 %v603, %v794
    %796 = vmatmul.f32.gmra.mxu0 %v795
    %v797 = vpop.f32.mrf.mxu0
    %v798 = vadd.f32 %v744, %v797
    %799 = vdwg.mxu0
    %v800 = vand.u32 %v80, 4294901760
    %801 = vmatpush.msra.mxu0 %v800
    %v802 = vand.u32 %v79, 4294901760
    %803 = vmatpush.msra.mxu0 %v802
    %v804 = vand.u32 %v78, 4294901760
    %805 = vmatpush.msra.mxu0 %v804
    %v806 = vand.u32 %v77, 4294901760
    %807 = vmatpush.msra.mxu0 %v806
    %v808 = vand.u32 %v76, 4294901760
    %809 = vmatpush.msra.mxu0 %v808
    %v810 = vand.u32 %v75, 4294901760
    %811 = vmatpush.msra.mxu0 %v810
    %v812 = vand.u32 %v74, 4294901760
    %813 = vmatpush.msra.mxu0 %v812
    %v814 = vand.u32 %v73, 4294901760
    %815 = vmatpush.msra.mxu0 %v814
    %v816 = vand.u32 %v72, 4294901760
    %817 = vmatpush.msra.mxu0 %v816
    %v818 = vand.u32 %v71, 4294901760
    %819 = vmatpush.msra.mxu0 %v818
    %v820 = vand.u32 %v70, 4294901760
    %821 = vmatpush.msra.mxu0 %v820
    %v822 = vand.u32 %v69, 4294901760
    %823 = vmatpush.msra.mxu0 %v822
    %v824 = vand.u32 %v68, 4294901760
    %825 = vmatpush.msra.mxu0 %v824
    %v826 = vand.u32 %v67, 4294901760
    %827 = vmatpush.msra.mxu0 %v826
    %v828 = vand.u32 %v66, 4294901760
    %829 = vmatpush.msra.mxu0 %v828
    %v830 = vand.u32 %v65, 4294901760
    %831 = vmatpush.msra.mxu0 %v830
    %v832 = vand.u32 %v603, 4294901760
    %v833 = vsub.f32 %v603, %v832
    %v834 = vand.u32 %v833, 4294901760
    %835 = vmatmul.f32.gmra.mxu0 %v834
    %v836 = vpop.f32.mrf.mxu0
    %v837 = vadd.f32 %v798, %v836
    %838 = vdwg.mxu0
    %v839 = vand.u32 %v80, 4294901760
    %v840 = vsub.f32 %v80, %v839
    %v841 = vand.u32 %v840, 4294901760
    %842 = vmatpush.msra.mxu0 %v841
    %v843 = vand.u32 %v79, 4294901760
    %v844 = vsub.f32 %v79, %v843
    %v845 = vand.u32 %v844, 4294901760
    %846 = vmatpush.msra.mxu0 %v845
    %v847 = vand.u32 %v78, 4294901760
    %v848 = vsub.f32 %v78, %v847
    %v849 = vand.u32 %v848, 4294901760
    %850 = vmatpush.msra.mxu0 %v849
    %v851 = vand.u32 %v77, 4294901760
    %v852 = vsub.f32 %v77, %v851
    %v853 = vand.u32 %v852, 4294901760
    %854 = vmatpush.msra.mxu0 %v853
    %v855 = vand.u32 %v76, 4294901760
    %v856 = vsub.f32 %v76, %v855
    %v857 = vand.u32 %v856, 4294901760
    %858 = vmatpush.msra.mxu0 %v857
    %v859 = vand.u32 %v75, 4294901760
    %v860 = vsub.f32 %v75, %v859
    %v861 = vand.u32 %v860, 4294901760
    %862 = vmatpush.msra.mxu0 %v861
    %v863 = vand.u32 %v74, 4294901760
    %v864 = vsub.f32 %v74, %v863
    %v865 = vand.u32 %v864, 4294901760
    %866 = vmatpush.msra.mxu0 %v865
    %v867 = vand.u32 %v73, 4294901760
    %v868 = vsub.f32 %v73, %v867
    %v869 = vand.u32 %v868, 4294901760
    %870 = vmatpush.msra.mxu0 %v869
    %v871 = vand.u32 %v72, 4294901760
    %v872 = vsub.f32 %v72, %v871
    %v873 = vand.u32 %v872, 4294901760
    %874 = vmatpush.msra.mxu0 %v873
    %v875 = vand.u32 %v71, 4294901760
    %v876 = vsub.f32 %v71, %v875
    %v877 = vand.u32 %v876, 4294901760
    %878 = vmatpush.msra.mxu0 %v877
    %v879 = vand.u32 %v70, 4294901760
    %v880 = vsub.f32 %v70, %v879
    %v881 = vand.u32 %v880, 4294901760
    %882 = vmatpush.msra.mxu0 %v881
    %v883 = vand.u32 %v69, 4294901760
    %v884 = vsub.f32 %v69, %v883
    %v885 = vand.u32 %v884, 4294901760
    %886 = vmatpush.msra.mxu0 %v885
    %v887 = vand.u32 %v68, 4294901760
    %v888 = vsub.f32 %v68, %v887
    %v889 = vand.u32 %v888, 4294901760
    %890 = vmatpush.msra.mxu0 %v889
    %v891 = vand.u32 %v67, 4294901760
    %v892 = vsub.f32 %v67, %v891
    %v893 = vand.u32 %v892, 4294901760
    %894 = vmatpush.msra.mxu0 %v893
    %v895 = vand.u32 %v66, 4294901760
    %v896 = vsub.f32 %v66, %v895
    %v897 = vand.u32 %v896, 4294901760
    %898 = vmatpush.msra.mxu0 %v897
    %v899 = vand.u32 %v65, 4294901760
    %v900 = vsub.f32 %v65, %v899
    %v901 = vand.u32 %v900, 4294901760
    %902 = vmatpush.msra.mxu0 %v901
    %v903 = vand.u32 %v603, 4294901760
    %904 = vmatmul.f32.gmra.mxu0 %v903
    %v905 = vpop.f32.mrf.mxu0
    %v906 = vadd.f32 %v837, %v905
    %907 = vdwg.mxu0
    %v908 = vand.u32 %v80, 4294901760
    %909 = vmatpush.msra.mxu0 %v908
    %v910 = vand.u32 %v79, 4294901760
    %911 = vmatpush.msra.mxu0 %v910
    %v912 = vand.u32 %v78, 4294901760
    %913 = vmatpush.msra.mxu0 %v912
    %v914 = vand.u32 %v77, 4294901760
    %915 = vmatpush.msra.mxu0 %v914
    %v916 = vand.u32 %v76, 4294901760
    %917 = vmatpush.msra.mxu0 %v916
    %v918 = vand.u32 %v75, 4294901760
    %919 = vmatpush.msra.mxu0 %v918
    %v920 = vand.u32 %v74, 4294901760
    %921 = vmatpush.msra.mxu0 %v920
    %v922 = vand.u32 %v73, 4294901760
    %923 = vmatpush.msra.mxu0 %v922
    %v924 = vand.u32 %v72, 4294901760
    %925 = vmatpush.msra.mxu0 %v924
    %v926 = vand.u32 %v71, 4294901760
    %927 = vmatpush.msra.mxu0 %v926
    %v928 = vand.u32 %v70, 4294901760
    %929 = vmatpush.msra.mxu0 %v928
    %v930 = vand.u32 %v69, 4294901760
    %931 = vmatpush.msra.mxu0 %v930
    %v932 = vand.u32 %v68, 4294901760
    %933 = vmatpush.msra.mxu0 %v932
    %v934 = vand.u32 %v67, 4294901760
    %935 = vmatpush.msra.mxu0 %v934
    %v936 = vand.u32 %v66, 4294901760
    %937 = vmatpush.msra.mxu0 %v936
    %v938 = vand.u32 %v65, 4294901760
    %939 = vmatpush.msra.mxu0 %v938
    %v940 = vand.u32 %v603, 4294901760
    %941 = vmatmul.f32.gmra.mxu0 %v940
    %v942 = vpop.f32.mrf.mxu0
    %v943 = vadd.f32 %v906, %v942
    %944 = vdwg.mxu0
    %v946 = vrot.slane %v586, 1
    %v949 = vmul.f32 %v213, %v586
    %v950 = vmul.f32 %v228, %v946
    %v952 = vrot.slane %v943, 1
    %v955 = vmul.f32 %v949, %v943
    %v956 = vmul.f32 %v950, %v952
    %v959 = vrot.slane %v956, 7
    %v960 = vsel %vm241, %v959, %v955
    %962 = vst [vmem:[#allocation6] sm:$0x3] %v960
    %v963 = vld [vmem:[%s2] sm:$0xf]
    %v964 = vld [vmem:[%s2 + $0x4] sm:$0xf]
    %v965 = vld [vmem:[%s2 + $0x8] sm:$0xf]
    %v966 = vld [vmem:[%s2 + $0xc] sm:$0xf]
    %v967 = vpack.c.bf16 %v955, %v955
    %v968 = vpack.c.bf16 %v956, %v956
    %v971 = vunpack.c.l.b16 %v963
    %v972 = vunpack.c.l.b16 %v964
    %v973 = vpack.c.b16 %v972, %v971
    %vm975 = vcmask 130048
    %v977 = vsel %vm975, %v967, 0
    %979 = vmatpush.bf16.msra.mxu0 0
    %980 = vmatpush.bf16.msra.mxu0 0
    %981 = vmatpush.bf16.msra.mxu0 0
    %982 = vmatpush.bf16.msra.mxu0 0
    %983 = vmatpush.bf16.msra.mxu0 0
    %984 = vmatpush.bf16.msra.mxu0 0
    %985 = vmatpush.bf16.msra.mxu0 0
    %986 = vmatpush.bf16.msra.mxu0 %v973
    %987 = vmatmul.bf16.gmra.mxu0 %v977
    %v988 = vpop.f32.mrf.mxu0
    %v989 = vadd.f32 0.0, %v988
    %v990 = vpop.f32.mrf.mxu0
    %991 = vdwg.mxu0
    %v994 = vunpack.c.l.b16 %v965
    %v995 = vunpack.c.l.b16 %v966
    %v996 = vpack.c.b16 %v995, %v994
    %v999 = vsel %vm975, %v968, 0
    %1001 = vmatpush.bf16.msra.mxu0 0
    %1002 = vmatpush.bf16.msra.mxu0 0
    %1003 = vmatpush.bf16.msra.mxu0 0
    %1004 = vmatpush.bf16.msra.mxu0 0
    %1005 = vmatpush.bf16.msra.mxu0 0
    %1006 = vmatpush.bf16.msra.mxu0 0
    %1007 = vmatpush.bf16.msra.mxu0 0
    %1008 = vmatpush.bf16.msra.mxu0 %v996
    %1009 = vmatmul.bf16.gmra.mxu0 %v999
    %v1010 = vpop.f32.mrf.mxu0
    %v1011 = vadd.f32 0.0, %v1010
    %v1012 = vpop.f32.mrf.mxu0
    %1013 = vdwg.mxu0
    %v1016 = vrot.slane %v1011, 7
    %v1017 = vsel %vm241, %v1016, %v989
    %1019 = vst [vmem:[#allocation5] sm:$0x3] %v1017
    // Predicated region
    $region30: #{tpu_custom_call.1} parent=1 // pred_check
      _
    $region31: #{tpu_custom_call.1} parent=1 // pred_check_branch
      %1021 = sbr.rel (0) target = $region33
    $region32: #{tpu_custom_call.1} parent=1 // pred_region
      %1023 = vsyncadd [#allocation4], 0
      %s1025 = sshll.u32 [#allocation5], 4
      %s1026 = int_to_ptr.vmem [resolvable:$true] %s1025
      %s1027 = sshll.u32 %s6, 4
      %s1028 = int_to_ptr.hbm [resolvable:$true] %s1027
      %1030 = dma.vmem_to_hbm [thread:$0]  %s1026, 32, %s1028, [#allocation4]
    $region33: #{tpu_custom_call.1} parent=1 // pred_fallthru
      _
    // Predicated region
    $region34: #{tpu_custom_call.1} parent=1 // pred_check
      _
    $region35: #{tpu_custom_call.1} parent=1 // pred_check_branch
      %1032 = sbr.rel (0) target = $region37
    $region36: #{tpu_custom_call.1} parent=1 // pred_region
      %1034 = vsyncadd [#allocation7], 0
      %s1036 = sshll.u32 [#allocation6], 4
      %s1037 = int_to_ptr.vmem [resolvable:$true] %s1036
      %s1038 = sshll.u32 %s7, 4
      %s1039 = int_to_ptr.hbm [resolvable:$true] %s1038
      %1041 = dma.vmem_to_hbm [thread:$0]  %s1037, 32, %s1039, [#allocation7]
    $region37: #{tpu_custom_call.1} parent=1 // pred_fallthru
      _
    // Predicated region
    $region38: #{tpu_custom_call.1} parent=1 // pred_check
      _
    $region39: #{tpu_custom_call.1} parent=1 // pred_check_branch
      %1043 = sbr.rel (0) target = $region41
    $region40: #{tpu_custom_call.1} parent=1 // pred_region
      %1045 = dma.done [#allocation4], 32
    $region41: #{tpu_custom_call.1} parent=1 // pred_fallthru
      _
    // Predicated region
    $region42: #{tpu_custom_call.1} parent=1 // pred_check
      _
    $region43: #{tpu_custom_call.1} parent=1 // pred_check_branch
      %1047 = sbr.rel (0) target = $region45
    $region44: #{tpu_custom_call.1} parent=1 // pred_region
      %1049 = dma.done [#allocation7], 32
    $region45: #{tpu_custom_call.1} parent=1 // pred_fallthru
      _
    %1050 = vsyncpa [#allocation3], 1
    %1051 = vsyncpa [#allocation4], 1
    %1052 = vsyncpa [#allocation7], 1

</llo_original>
